<compile_context>
chip_gen: v5e
topology: v5e:2x2
jax: 0.10.0
libtpu: 0.0.40
codegen_flags: <defaults>
</compile_context>

<pallas_src>
import math

import jax
import jax.numpy as jnp
from jax import lax
from jax.experimental import pallas as pl
from jax.experimental.pallas import tpu as pltpu

_LANES = 128
_SUBLANES = 8                              # f32 sublanes per chunk
_CHUNK_BYTES = _SUBLANES * _LANES * 4      # 4 KiB per chunk (any dtype)
_VMEM_INPUT_BUDGET = 40 << 20              # double-buffered input blocks
_VMEM_LIMIT_CAP = 48 << 20                 # keep headroom on v7x (64 MiB phys)


def _cdiv(a, b):
    return -(-a // b)


def _tpu_defaults():
    """(num_cores, block_chunks) tuned per TPU generation; safe fallback."""
    kind = ""
    try:
        dev = jax.devices()[0]
        if dev.platform == "tpu":
            kind = dev.device_kind.lower()
    except Exception:
        kind = ""
    if "v7" in kind or "7x" in kind:
        return 2, 1024          # 2 TensorCores, 4 MiB blocks
    if "v6" in kind:
        return 1, 1024          # 4 MiB blocks
    if "v5" in kind:
        return 1, 512           # 2 MiB blocks
    return 1, 512


def _slab_dtype(dt):
    return jnp.bfloat16 if dt == jnp.bfloat16 else jnp.float32


def _to_chunks(x, pad_value, slab_dtype):
    """Flatten x into a lane-dense (chunks, sub, 128) slab.

    Free reshape when numel is a multiple of the chunk size (typical real
    sizes); otherwise only the tail is padded with a reduction-neutral value
    (log(1)=0, (0-0)^2=0).
    """
    sub = 2 * _SUBLANES if slab_dtype == jnp.bfloat16 else _SUBLANES
    chunk = sub * _LANES
    flat = jnp.ravel(x).astype(slab_dtype)
    n = flat.shape[0]
    pad = (-n) % chunk
    if pad:
        # TODO(synk): ragged-tail tensors still pay one extra HBM copy here; a
        # 1-D-block streaming path with element-level in-kernel masking would
        # remove it, but numel is a chunk multiple for typical model tensors.
        flat = jnp.pad(flat, (0, pad), constant_values=pad_value)
    return flat.reshape(-1, sub, _LANES)


def _block_meta(chunks, block_chunks):
    blk = max(1, min(block_chunks, chunks))
    nb = _cdiv(chunks, blk)
    rem = chunks - (nb - 1) * blk          # valid chunks in the last block
    return blk, nb, rem


def fused_rate_distortion_sums(x_hat, target, likelihoods,
                               block_chunks=None, num_cores=None):
    """Single Pallas call returning
         sse     = sum((x_hat - target)**2)
         sum_log = sum_k sum(log(likelihoods[k]))
    """
    assert x_hat.shape == target.shape
    likelihoods = list(likelihoods)
    assert len(likelihoods) >= 1

    auto_cores, auto_blk = _tpu_defaults()
    if num_cores is None:
        num_cores = auto_cores
    if block_chunks is None:
        block_chunks = auto_blk

    n_lik = len(likelihoods)
    n_inputs = 2 + n_lik

    # Cap block size so double-buffered input blocks fit the VMEM budget.
    max_chunks = max(8, _VMEM_INPUT_BUDGET // (n_inputs * 2 * _CHUNK_BYTES))
    block_chunks = max(1, min(block_chunks, max_chunks))

    img_dtype = (jnp.bfloat16
                 if (x_hat.dtype == jnp.bfloat16
                     and target.dtype == jnp.bfloat16)
                 else jnp.float32)
    a = _to_chunks(x_hat, 0.0, img_dtype)
    b = _to_chunks(target, 0.0, img_dtype)
    liks = [_to_chunks(l, 1.0, _slab_dtype(l.dtype)) for l in likelihoods]

    blk_img, nb_img, rem_img = _block_meta(a.shape[0], block_chunks)
    lik_meta = [_block_meta(l.shape[0], block_chunks) for l in liks]

    # Phase offsets in global block steps: [SSE | lik_0 | lik_1 | ...]
    offs = []
    off = nb_img
    for (_, nb, _) in lik_meta:
        offs.append(off)
        off += nb
    total_blocks = off
    spc = _cdiv(total_blocks, num_cores)       # grid steps per core
    grid = (num_cores, spc)

    # Clamped index maps: during inactive phases an input keeps pointing at an
    # already-resident block, so Pallas issues no redundant DMA.
    def img_index_map(c, j):
        g = c * spc + j
        return (jnp.minimum(g, nb_img - 1), 0, 0)

    def make_lik_index_map(off_k, nb_k):
        def index_map(c, j):
            g = c * spc + j
            return (jnp.clip(g - off_k, 0, nb_k - 1), 0, 0)
        return index_map

    in_specs = [
        pl.BlockSpec((blk_img,) + a.shape[1:], img_index_map),
        pl.BlockSpec((blk_img,) + b.shape[1:], img_index_map),
    ]
    for l, (blk, nb, _), o in zip(liks, lik_meta, offs):
        in_specs.append(
            pl.BlockSpec((blk,) + l.shape[1:], make_lik_index_map(o, nb)))

    out_shape = (
        jax.ShapeDtypeStruct((num_cores, _SUBLANES, _LANES), jnp.float32),
        jax.ShapeDtypeStruct((num_cores, _SUBLANES, _LANES), jnp.float32),
    )
    out_specs = [
        pl.BlockSpec((1, _SUBLANES, _LANES), lambda c, j: (c, 0, 0)),
        pl.BlockSpec((1, _SUBLANES, _LANES), lambda c, j: (c, 0, 0)),
    ]

    def _lane_partial(x_f32):
        # (blk, sub, 128) f32 -> (1, 8, 128) per-lane partial sum.
        p = jnp.sum(x_f32, axis=0)
        if p.shape[0] == 2 * _SUBLANES:        # bf16 slab: fold 16 -> 8 rows
            p = p[:_SUBLANES] + p[_SUBLANES:]
        return p[None]

    def kernel(*refs):
        a_ref, b_ref = refs[0], refs[1]
        lik_refs = refs[2:2 + n_lik]
        sse_ref, log_ref = refs[2 + n_lik], refs[3 + n_lik]

        c = pl.program_id(0)
        j = pl.program_id(1)
        g = c * spc + j                        # global block step

        # Per-core, per-lane accumulators = the resident output blocks.
        @pl.when(j == 0)
        def _():
            sse_ref[...] = jnp.zeros_like(sse_ref)
            log_ref[...] = jnp.zeros_like(log_ref)

        # ---- SSE phase: global blocks [0, nb_img) ---------------------------
        def sse_body(mask_chunks):
            d = (a_ref[...].astype(jnp.float32)
                 - b_ref[...].astype(jnp.float32))
            if mask_chunks is not None:        # static: only the ragged block
                cid = lax.broadcasted_iota(jnp.int32, d.shape, 0)
                d = jnp.where(cid < mask_chunks, d, 0.0)
            sse_ref[...] += _lane_partial(d * d)

        if rem_img == blk_img:
            @pl.when(g < nb_img)
            def _():
                sse_body(None)
        else:
            @pl.when(g < nb_img - 1)           # hot loop: no masking
            def _():
                sse_body(None)

            @pl.when(g == nb_img - 1)          # single masked last block
            def _():
                sse_body(rem_img)

        # ---- log-likelihood phases ------------------------------------------
        def make_log_body(ref):
            def log_body(mask_chunks):
                x = ref[...].astype(jnp.float32)
                if mask_chunks is not None:
                    cid = lax.broadcasted_iota(jnp.int32, x.shape, 0)
                    x = jnp.where(cid < mask_chunks, x, 1.0)
                log_ref[...] += _lane_partial(jnp.log(x))
            return log_body

        for ref, (blk, nb, rem), o in zip(lik_refs, lik_meta, offs):
            log_body = make_log_body(ref)
            if rem == blk:
                @pl.when((g >= o) & (g < o + nb))
                def _(log_body=log_body):
                    log_body(None)
            else:
                @pl.when((g >= o) & (g < o + nb - 1))   # hot loop: no masking
                def _(log_body=log_body):
                    log_body(None)

                @pl.when(g == o + nb - 1)               # masked last block
                def _(log_body=log_body, rem=rem):
                    log_body(rem)

    # VMEM: double-buffered input blocks (4 KiB per chunk, any dtype) + margin.
    need = 2 * (2 * blk_img * _CHUNK_BYTES)                   # x_hat + target
    need += sum(2 * blk * _CHUNK_BYTES for (blk, _, _) in lik_meta)
    vmem_limit = int(min(_VMEM_LIMIT_CAP, max(16 << 20, need + (8 << 20))))

    if num_cores > 1:
        dim_sem = (pltpu.CORE_PARALLEL, pltpu.ARBITRARY)
    else:
        dim_sem = ("arbitrary", "arbitrary")

    img_elems = int(x_hat.size)
    lik_elems = int(sum(int(l.size) for l in likelihoods))
    bytes_accessed = int(
        a.size * a.dtype.itemsize + b.size * b.dtype.itemsize
        + sum(int(l.size) * l.dtype.itemsize for l in liks)
        + 2 * num_cores * _SUBLANES * _LANES * 4)
    cost = pl.CostEstimate(flops=3 * img_elems + lik_elems,
                           transcendentals=lik_elems,
                           bytes_accessed=bytes_accessed)

    sse_part, log_part = pl.pallas_call(
        kernel,
        out_shape=out_shape,
        grid_spec=pltpu.PrefetchScalarGridSpec(
            num_scalar_prefetch=0,
            grid=grid,
            in_specs=in_specs,
            out_specs=out_specs,
        ),
        compiler_params=pltpu.CompilerParams(
            dimension_semantics=dim_sem,
            vmem_limit_bytes=vmem_limit),
        cost_estimate=cost,
    )(a, b, *liks)

    # Tiny final cross-lane reductions (num_cores x 8 x 128 partials each).
    return jnp.sum(sse_part), jnp.sum(log_part)


# ---------------------------------------------------------------------------
# RateDistortionLoss
# ---------------------------------------------------------------------------
class RateDistortionLoss:
    """JAX/Pallas port of the PyTorch RateDistortionLoss (forward only)."""

    _QUALITIES_TO_LAMBDA = {
        1: 0.0018, 2: 0.0035, 3: 0.0067, 4: 0.013,
        5: 0.025, 6: 0.0483, 7: 0.0932, 8: 0.18,
    }

    def __init__(self, quality):
        # Stored but unused in forward — exactly like the reference module.
        self.lmbda = self._QUALITIES_TO_LAMBDA[quality]

    def __call__(self, output, target):
        N, _, H, W = target.shape
        num_pixels = N * H * W

        likelihoods = list(output["likelihoods"].values())
        sse, sum_log = fused_rate_distortion_sums(
            output["x_hat"], target, likelihoods)

        out = {}
        # bpp = sum over tensors of sum(log(p)) / (-ln2 * num_pixels)
        out["bpp_loss"] = sum_log / (-math.log(2) * num_pixels)

        mse = sse / jnp.float32(math.prod(target.shape))
        out["mse_loss"] = mse
        # The reference module sets loss = mse_loss (lmbda unused in forward).
        out["loss"] = mse
        out["psnr"] = 10.0 * (jnp.log(1.0 / mse) / math.log(10.0))
        return out


# ---------------------------------------------------------------------------
# Main
# ---------------------------------------------------------------------------
if __name__ == "__main__":
    key = jax.random.PRNGKey(0)
    keys = jax.random.split(key, 12)
    (k1, k2, k3, k4, k5, k6, k7, k8, k9, k10, k11, k12) = keys

    # ---- check 1: shapes typical of an image-compression model output ------
    N, C, H, W = 2, 3, 16, 16
    target = jax.random.uniform(k1, (N, C, H, W), dtype=jnp.float32)
    x_hat = jnp.clip(
        target + 0.05 * jax.random.normal(k2, (N, C, H, W), dtype=jnp.float32),
        0.0, 1.0)
    lik_y = jax.random.uniform(k3, (N, 4, H // 2, W // 2),
                               minval=0.05, maxval=1.0, dtype=jnp.float32)
    lik_z = jax.random.uniform(k4, (N, 4, H // 4, W // 4),
                               minval=0.05, maxval=1.0, dtype=jnp.float32)

    output = {"x_hat": x_hat, "likelihoods": {"y": lik_y, "z": lik_z}}

    loss_fn = RateDistortionLoss(quality=3)
    res = loss_fn(output, target)
    res = jax.tree_util.tree_map(jax.block_until_ready, res)

    num_pixels = N * H * W
    ref_bpp = sum(
        jnp.sum(jnp.log(l)) / (-math.log(2) * num_pixels)
        for l in (lik_y, lik_z))
    ref_mse = jnp.mean((x_hat - target) ** 2)
    assert jnp.allclose(res["bpp_loss"], ref_bpp, rtol=1e-5, atol=1e-5)
    assert jnp.allclose(res["mse_loss"], ref_mse, rtol=1e-5, atol=1e-7)
    assert jnp.allclose(res["loss"], ref_mse, rtol=1e-5, atol=1e-7)
    assert jnp.allclose(
        res["psnr"], 10.0 * jnp.log(1.0 / ref_mse) / math.log(10.0),
        rtol=1e-5, atol=1e-5)

    # ---- check 2: exercise multi-block phases, gated partial-block masking
    # and the tail-pad fallback by forcing a tiny block size ------------------
    xh2 = jax.random.uniform(k5, (1, 6, 16, 32), dtype=jnp.float32)   # 3 chunks
    tg2 = jax.random.uniform(k6, (1, 6, 16, 32), dtype=jnp.float32)
    ly2 = jax.random.uniform(k7, (1, 24, 8, 16),
                             minval=0.05, maxval=1.0, dtype=jnp.float32)  # 3 chunks
    lz2 = jax.random.uniform(k8, (1, 5, 4, 8),
                             minval=0.05, maxval=1.0, dtype=jnp.float32)  # padded
    sse2, slog2 = fused_rate_distortion_sums(xh2, tg2, [ly2, lz2],
                                             block_chunks=2)
    sse2, slog2 = jax.block_until_ready(sse2), jax.block_until_ready(slog2)
    ref_sse2 = jnp.sum((xh2 - tg2) ** 2)
    ref_slog2 = jnp.sum(jnp.log(ly2)) + jnp.sum(jnp.log(lz2))
    assert jnp.allclose(sse2, ref_sse2, rtol=1e-5, atol=1e-5)
    assert jnp.allclose(slog2, ref_slog2, rtol=1e-5, atol=1e-4)

    # ---- check 3: native bf16 streaming (sub=16 slabs, in-kernel f32 cast) --
    xh3 = jax.random.uniform(k9, (2, 8, 16, 16),
                             dtype=jnp.float32).astype(jnp.bfloat16)
    tg3 = jax.random.uniform(k10, (2, 8, 16, 16),
                             dtype=jnp.float32).astype(jnp.bfloat16)
    ly3 = jax.random.uniform(k11, (2, 8, 8, 8), minval=0.05, maxval=1.0,
                             dtype=jnp.float32).astype(jnp.bfloat16)
    lz3 = jax.random.uniform(k12, (2, 4, 4, 4), minval=0.05, maxval=1.0,
                             dtype=jnp.float32).astype(jnp.bfloat16)
    sse3, slog3 = fused_rate_distortion_sums(xh3, tg3, [ly3, lz3])
    sse3, slog3 = jax.block_until_ready(sse3), jax.block_until_ready(slog3)
    ref_sse3 = jnp.sum((xh3.astype(jnp.float32) - tg3.astype(jnp.float32)) ** 2)
    ref_slog3 = (jnp.sum(jnp.log(ly3.astype(jnp.float32)))
                 + jnp.sum(jnp.log(lz3.astype(jnp.float32))))
    assert jnp.allclose(sse3, ref_sse3, rtol=1e-4, atol=1e-3)
    assert jnp.allclose(slog3, ref_slog3, rtol=1e-4, atol=1e-3)

    print("KERNEL_OK")
</pallas_src>

<mosaic_0001>
module attributes {stable_mosaic.version = 11 : i64} {
  func.func @kernel(%arg0: i32, %arg1: i32, %arg2: memref<2x8x128xf32, #tpu.memory_space<vmem>>, %arg3: memref<2x8x128xf32, #tpu.memory_space<vmem>>, %arg4: memref<1x8x128xf32, #tpu.memory_space<vmem>>, %arg5: memref<1x8x128xf32, #tpu.memory_space<vmem>>, %arg6: memref<1x8x128xf32, #tpu.memory_space<vmem>>, %arg7: memref<1x8x128xf32, #tpu.memory_space<vmem>>) attributes {dimension_semantics = [#tpu.dimension_semantics<arbitrary>, #tpu.dimension_semantics<arbitrary>], iteration_bounds = array<i64: 1, 3>, scalar_prefetch = 0 : i64, scratch_operands = 0 : i64, tpu.core_type = #tpu.core_type<tc>, window_params = [{transform_indices = @transform_0, window_bounds = array<i64: 2, 8, 128>}, {transform_indices = @transform_1, window_bounds = array<i64: 2, 8, 128>}, {transform_indices = @transform_2, window_bounds = array<i64: 1, 8, 128>}, {transform_indices = @transform_3, window_bounds = array<i64: 1, 8, 128>}, {transform_indices = @transform_4, window_bounds = array<i64: 1, 8, 128>}, {transform_indices = @transform_5, window_bounds = array<i64: 1, 8, 128>}]} {
    %c3_i32 = arith.constant 3 : i32
    %0 = arith.muli %arg0, %c3_i32 : i32
    %1 = arith.addi %0, %arg1 : i32
    %c0_i32 = arith.constant 0 : i32
    %2 = arith.cmpi eq, %arg1, %c0_i32 : i32
    %3 = arith.extui %2 : i1 to i32
    %c0_i32_0 = arith.constant 0 : i32
    %4 = arith.cmpi ne, %3, %c0_i32_0 : i32
    scf.if %4 {
      %cst = arith.constant 0.000000e+00 : f32
      %18 = vector.broadcast %cst : f32 to vector<1x8x128xf32>
      %c0 = arith.constant 0 : index
      %c0_7 = arith.constant 0 : index
      %c0_8 = arith.constant 0 : index
      %19 = vector.load %arg6[%c0, %c0_7, %c0_8] : memref<1x8x128xf32, #tpu.memory_space<vmem>>, vector<1x8x128xf32>
      tpu.vector_store %arg6[%c0, %c0_7, %c0_8], %18 {strides = array<i32>} : memref<1x8x128xf32, #tpu.memory_space<vmem>>, vector<1x8x128xf32>,
      %cst_9 = arith.constant 0.000000e+00 : f32
      %20 = vector.broadcast %cst_9 : f32 to vector<1x8x128xf32>
      %c0_10 = arith.constant 0 : index
      %c0_11 = arith.constant 0 : index
      %c0_12 = arith.constant 0 : index
      %21 = vector.load %arg7[%c0_10, %c0_11, %c0_12] : memref<1x8x128xf32, #tpu.memory_space<vmem>>, vector<1x8x128xf32>
      tpu.vector_store %arg7[%c0_10, %c0_11, %c0_12], %20 {strides = array<i32>} : memref<1x8x128xf32, #tpu.memory_space<vmem>>, vector<1x8x128xf32>,
    } else {
    }
    %c1_i32 = arith.constant 1 : i32
    %5 = arith.cmpi slt, %1, %c1_i32 : i32
    %6 = arith.extui %5 : i1 to i32
    %c0_i32_1 = arith.constant 0 : i32
    %7 = arith.cmpi ne, %6, %c0_i32_1 : i32
    scf.if %7 {
      %c0 = arith.constant 0 : index
      %c0_7 = arith.constant 0 : index
      %c0_8 = arith.constant 0 : index
      %18 = vector.load %arg2[%c0, %c0_7, %c0_8] : memref<2x8x128xf32, #tpu.memory_space<vmem>>, vector<2x8x128xf32>
      %c0_9 = arith.constant 0 : index
      %c0_10 = arith.constant 0 : index
      %c0_11 = arith.constant 0 : index
      %19 = vector.load %arg3[%c0_9, %c0_10, %c0_11] : memref<2x8x128xf32, #tpu.memory_space<vmem>>, vector<2x8x128xf32>
      %20 = arith.subf %18, %19 : vector<2x8x128xf32>
      %c0_12 = arith.constant 0 : index
      %c0_13 = arith.constant 0 : index
      %c0_14 = arith.constant 0 : index
      %21 = vector.load %arg6[%c0_12, %c0_13, %c0_14] : memref<1x8x128xf32, #tpu.memory_space<vmem>>, vector<1x8x128xf32>
      %22 = arith.mulf %20, %20 : vector<2x8x128xf32>
      %cst = arith.constant dense<0.000000e+00> : vector<8x128xf32>
      %23 = vector.multi_reduction <add>, %22, %cst [0] : vector<2x8x128xf32> to vector<8x128xf32>
      %24 = vector.shape_cast %23 : vector<8x128xf32> to vector<1x8x128xf32>
      %25 = arith.addf %21, %24 : vector<1x8x128xf32>
      %c0_15 = arith.constant 0 : index
      %c0_16 = arith.constant 0 : index
      %c0_17 = arith.constant 0 : index
      %26 = vector.load %arg6[%c0_15, %c0_16, %c0_17] : memref<1x8x128xf32, #tpu.memory_space<vmem>>, vector<1x8x128xf32>
      tpu.vector_store %arg6[%c0_15, %c0_16, %c0_17], %25 {strides = array<i32>} : memref<1x8x128xf32, #tpu.memory_space<vmem>>, vector<1x8x128xf32>,
    } else {
    }
    %c1_i32_2 = arith.constant 1 : i32
    %8 = arith.cmpi sge, %1, %c1_i32_2 : i32
    %c2_i32 = arith.constant 2 : i32
    %9 = arith.cmpi slt, %1, %c2_i32 : i32
    %10 = arith.andi %8, %9 : i1
    %11 = arith.extui %10 : i1 to i32
    %c0_i32_3 = arith.constant 0 : i32
    %12 = arith.cmpi ne, %11, %c0_i32_3 : i32
    scf.if %12 {
      %c0 = arith.constant 0 : index
      %c0_7 = arith.constant 0 : index
      %c0_8 = arith.constant 0 : index
      %18 = vector.load %arg4[%c0, %c0_7, %c0_8] : memref<1x8x128xf32, #tpu.memory_space<vmem>>, vector<1x8x128xf32>
      %c0_9 = arith.constant 0 : index
      %c0_10 = arith.constant 0 : index
      %c0_11 = arith.constant 0 : index
      %19 = vector.load %arg7[%c0_9, %c0_10, %c0_11] : memref<1x8x128xf32, #tpu.memory_space<vmem>>, vector<1x8x128xf32>
      %20 = math.log %18 : vector<1x8x128xf32>
      %cst = arith.constant dense<0.000000e+00> : vector<8x128xf32>
      %21 = vector.multi_reduction <add>, %20, %cst [0] : vector<1x8x128xf32> to vector<8x128xf32>
      %22 = vector.shape_cast %21 : vector<8x128xf32> to vector<1x8x128xf32>
      %23 = arith.addf %19, %22 : vector<1x8x128xf32>
      %c0_12 = arith.constant 0 : index
      %c0_13 = arith.constant 0 : index
      %c0_14 = arith.constant 0 : index
      %24 = vector.load %arg7[%c0_12, %c0_13, %c0_14] : memref<1x8x128xf32, #tpu.memory_space<vmem>>, vector<1x8x128xf32>
      tpu.vector_store %arg7[%c0_12, %c0_13, %c0_14], %23 {strides = array<i32>} : memref<1x8x128xf32, #tpu.memory_space<vmem>>, vector<1x8x128xf32>,
    } else {
    }
    %c2_i32_4 = arith.constant 2 : i32
    %13 = arith.cmpi sge, %1, %c2_i32_4 : i32
    %c3_i32_5 = arith.constant 3 : i32
    %14 = arith.cmpi slt, %1, %c3_i32_5 : i32
    %15 = arith.andi %13, %14 : i1
    %16 = arith.extui %15 : i1 to i32
    %c0_i32_6 = arith.constant 0 : i32
    %17 = arith.cmpi ne, %16, %c0_i32_6 : i32
    scf.if %17 {
      %c0 = arith.constant 0 : index
      %c0_7 = arith.constant 0 : index
      %c0_8 = arith.constant 0 : index
      %18 = vector.load %arg5[%c0, %c0_7, %c0_8] : memref<1x8x128xf32, #tpu.memory_space<vmem>>, vector<1x8x128xf32>
      %c0_9 = arith.constant 0 : index
      %c0_10 = arith.constant 0 : index
      %c0_11 = arith.constant 0 : index
      %19 = vector.load %arg7[%c0_9, %c0_10, %c0_11] : memref<1x8x128xf32, #tpu.memory_space<vmem>>, vector<1x8x128xf32>
      %20 = math.log %18 : vector<1x8x128xf32>
      %cst = arith.constant dense<0.000000e+00> : vector<8x128xf32>
      %21 = vector.multi_reduction <add>, %20, %cst [0] : vector<1x8x128xf32> to vector<8x128xf32>
      %22 = vector.shape_cast %21 : vector<8x128xf32> to vector<1x8x128xf32>
      %23 = arith.addf %19, %22 : vector<1x8x128xf32>
      %c0_12 = arith.constant 0 : index
      %c0_13 = arith.constant 0 : index
      %c0_14 = arith.constant 0 : index
      %24 = vector.load %arg7[%c0_12, %c0_13, %c0_14] : memref<1x8x128xf32, #tpu.memory_space<vmem>>, vector<1x8x128xf32>
      tpu.vector_store %arg7[%c0_12, %c0_13, %c0_14], %23 {strides = array<i32>} : memref<1x8x128xf32, #tpu.memory_space<vmem>>, vector<1x8x128xf32>,
    } else {
    }
    return
  }
  func.func @transform_0(%arg0: i32, %arg1: i32) -> (i32, i32, i32) {
    %c3_i32 = arith.constant 3 : i32
    %0 = arith.muli %arg0, %c3_i32 : i32
    %1 = arith.addi %0, %arg1 : i32
    %c0_i32 = arith.constant 0 : i32
    %2 = arith.minsi %1, %c0_i32 : i32
    %c0_i32_0 = arith.constant 0 : i32
    %c0_i32_1 = arith.constant 0 : i32
    %c0_i32_2 = arith.constant 0 : i32
    return %2, %c0_i32_0, %c0_i32_1 : i32, i32, i32
  }
  func.func @transform_1(%arg0: i32, %arg1: i32) -> (i32, i32, i32) {
    %c3_i32 = arith.constant 3 : i32
    %0 = arith.muli %arg0, %c3_i32 : i32
    %1 = arith.addi %0, %arg1 : i32
    %c0_i32 = arith.constant 0 : i32
    %2 = arith.minsi %1, %c0_i32 : i32
    %c0_i32_0 = arith.constant 0 : i32
    %c0_i32_1 = arith.constant 0 : i32
    %c0_i32_2 = arith.constant 0 : i32
    return %2, %c0_i32_0, %c0_i32_1 : i32, i32, i32
  }
  func.func @transform_2(%arg0: i32, %arg1: i32) -> (i32, i32, i32) {
    %c3_i32 = arith.constant 3 : i32
    %0 = arith.muli %arg0, %c3_i32 : i32
    %1 = arith.addi %0, %arg1 : i32
    %c1_i32 = arith.constant 1 : i32
    %2 = arith.subi %1, %c1_i32 : i32
    %c0_i32 = arith.constant 0 : i32
    %c0_i32_0 = arith.constant 0 : i32
    %3 = arith.maxsi %c0_i32, %2 : i32
    %4 = arith.minsi %c0_i32_0, %3 : i32
    %c0_i32_1 = arith.constant 0 : i32
    %c0_i32_2 = arith.constant 0 : i32
    %c0_i32_3 = arith.constant 0 : i32
    return %4, %c0_i32_1, %c0_i32_2 : i32, i32, i32
  }
  func.func @transform_3(%arg0: i32, %arg1: i32) -> (i32, i32, i32) {
    %c3_i32 = arith.constant 3 : i32
    %0 = arith.muli %arg0, %c3_i32 : i32
    %1 = arith.addi %0, %arg1 : i32
    %c2_i32 = arith.constant 2 : i32
    %2 = arith.subi %1, %c2_i32 : i32
    %c0_i32 = arith.constant 0 : i32
    %c0_i32_0 = arith.constant 0 : i32
    %3 = arith.maxsi %c0_i32, %2 : i32
    %4 = arith.minsi %c0_i32_0, %3 : i32
    %c0_i32_1 = arith.constant 0 : i32
    %c0_i32_2 = arith.constant 0 : i32
    %c0_i32_3 = arith.constant 0 : i32
    return %4, %c0_i32_1, %c0_i32_2 : i32, i32, i32
  }
  func.func @transform_4(%arg0: i32, %arg1: i32) -> (i32, i32, i32) {
    %c0_i32 = arith.constant 0 : i32
    %c0_i32_0 = arith.constant 0 : i32
    %c0_i32_1 = arith.constant 0 : i32
    return %arg0, %c0_i32, %c0_i32_0 : i32, i32, i32
  }
  func.func @transform_5(%arg0: i32, %arg1: i32) -> (i32, i32, i32) {
    %c0_i32 = arith.constant 0 : i32
    %c0_i32_0 = arith.constant 0 : i32
    %c0_i32_1 = arith.constant 0 : i32
    return %arg0, %c0_i32, %c0_i32_0 : i32, i32, i32
  }
}

</mosaic_0001>

<llo_original>
// kernel: tpu_custom_call.1
$region0: #{tpu_custom_call.1}
  #allocation0 [shape = 'u32[]', space=smem, size = 0x4, offset = 0x4, fixed_abs, tag = 'smem constant byte address 0x4 - core index']
  #allocation1 [shape = 'u32[72,128]{1,0:T(1,128)}', space=vmem, size = 0x9000, scoped, tag = 'internal scratch']
  %s0 = inlined_call_operand.hbm [shape: f32[2,8,128], index: 0, kind: input, shape index: {}]
  %s1 = inlined_call_operand.hbm [shape: f32[2,8,128], index: 1, kind: input, shape index: {}]
  %s2 = inlined_call_operand.hbm [shape: f32[1,8,128], index: 2, kind: input, shape index: {}]
  %s3 = inlined_call_operand.hbm [shape: f32[1,8,128], index: 3, kind: input, shape index: {}]
  %s4 = inlined_call_operand.hbm [shape: f32[1,8,128], index: 4, kind: output, shape index: {0}]
  %s5 = inlined_call_operand.hbm [shape: f32[1,8,128], index: 5, kind: output, shape index: {1}]
  %6 = xla_tuple %s4, %s5
  %s7 = sld [smem:[#allocation0]]
  $region89: #{tpu_custom_call.1} parent=0
    _
  %s9 = ssub.s32 1, %s7
  %s10 = scalar_select 0, %s9, %s7
  $region1: #{tpu_custom_call.1} parent=0
    #allocation2 [shape = 'u8[16384]{0}', space=vmem, size = 0x4000, scoped, tag = 'input window, operand 0']
    #allocation3 [shape = 's32[2]{0}', space=sflag, size = 0x8, scoped, tag = 'scoped memory for tpu_custom_call.1']
    #allocation4 [shape = 's32[2]{0}', space=sflag, size = 0x8, scoped, tag = 'scoped memory for tpu_custom_call.1']
    #allocation5 [shape = 'u8[16384]{0}', space=vmem, size = 0x4000, scoped, tag = 'input window, operand 1']
    #allocation6 [shape = 's32[2]{0}', space=sflag, size = 0x8, scoped, tag = 'scoped memory for tpu_custom_call.1']
    #allocation7 [shape = 'u8[8192]{0}', space=vmem, size = 0x2000, scoped, tag = 'input window, operand 2']
    #allocation8 [shape = 'u8[8192]{0}', space=vmem, size = 0x2000, scoped, tag = 'input window, operand 3']
    #allocation9 [shape = 's32[2]{0}', space=sflag, size = 0x8, scoped, tag = 'scoped memory for tpu_custom_call.1']
    #allocation10 [shape = 'u8[4096]{0}', space=vmem, size = 0x1000, scoped, tag = 'output window, operand 0, single buffered']
    #allocation11 [shape = 'u8[4096]{0}', space=vmem, size = 0x1000, scoped, tag = 'output window, operand 1, single buffered']
    #allocation12 [shape = 's32[1]{0}', space=sflag, size = 0x4, scoped, tag = 'scoped memory for tpu_custom_call.1']
    %11 = vsyncpa [#allocation3], 0
    %s12 = scalar_lea.sflag [#allocation3], 1
    %13 = vsyncpa %s12, 0
    %14 = vsyncpa [#allocation6], 0
    %s15 = scalar_lea.sflag [#allocation6], 1
    %16 = vsyncpa %s15, 0
    %17 = vsyncpa [#allocation9], 0
    %s18 = scalar_lea.sflag [#allocation9], 1
    %19 = vsyncpa %s18, 0
    %20 = vsyncpa [#allocation4], 0
    %21 = vsyncpa [#allocation12], 0
    loop: start=0, step=1, limit=5
    $region2: #{tpu_custom_call.1} parent=1 // loop_pre_header
      _
    $region3: #{tpu_custom_call.1} parent=1 // loop_header
      %s23 = sphi 0, %s27
      %p24 = scmp.ge.s32.totalorder %s23, 5
      %s30 = sphi 0, %s42
      %s31 = sphi 0, %s38
      %s32 = sphi 0, %s30
      %s33 = sphi 0, %s31
      %s34 = sphi 0, %s32
      %s35 = sphi 0, %s33
      %s53 = sphi 0, %s55
      %s56 = sphi 0, %s53
      %s57 = sphi 0, %s56
      %s73 = sphi 0, %s57
      %s87 = sphi 0, %s89
      %s90 = sphi 0, %s87
      %s91 = sphi 0, %s90
      %s107 = sphi 0, %s91
      %s127 = sphi 0, %s129
      %s130 = sphi 0, %s127
      %s131 = sphi 0, %s130
      %s147 = sphi 0, %s131
      %s167 = sphi 0, %s169
      %s170 = sphi 0, %s167
      %s171 = sphi 0, %s170
      %s187 = sphi 0, %s171
      %s193 = sphi 0, %s195
      %s196 = sphi 0, %s193
      %s197 = sphi 0, %s196
      %s213 = sphi 0, %s197
      %s219 = sphi 0, %s221
      %s222 = sphi 0, %s219
      %s223 = sphi 0, %s222
      %s239 = sphi 0, %s223
    $region4: #{tpu_custom_call.1} parent=1 // loop_header_branch
      %26 = sbr.rel (%p24) target = $region8
    $region5: #{tpu_custom_call.1} parent=1 // loop_body
      %s28 = ssub.s32 %s23, 1
      %s29 = ssub.s32 %s23, 2
      %s36 = sadd.s32 1, %s31
      %p37 = scmp.ge.s32.totalorder %s36, 3
      %s38 = scalar_select %p37, 0, %s36
      %s39 = sadd.s32 1, %s30
      %s40 = scalar_select %p37, %s39, %s30
      %p41 = scmp.ge.s32.totalorder %s40, 1
      %s42 = scalar_select %p41, 0, %s40
      %s43 = smul.u32 %s30, 3
      %s44 = sadd.s32 %s43, %s31
      %p45 = scmp.lt.s32.totalorder %s44, 0
      %s46 = scalar_select %p45, %s44, 0
      %s47 = smul.u32 %s42, 3
      %s48 = sadd.s32 %s47, %s38
      %p49 = scmp.lt.s32.totalorder %s48, 0
      %s50 = scalar_select %p49, %s48, 0
      %s51 = ssub.s32 %s46, %s50
      %p52 = scmp.eq.s32.totalorder %s51, 0
      %s54 = sadd.s32 %s53, 1
      %s55 = scalar_select %p52, %s53, %s54
      %p58 = pneg %p52
      %p59 = scmp.eq.s32.totalorder %s23, 2
      %p60 = por %p58, %p59
      %p61 = scmp.ne.s32.totalorder %s53, %s56
      %p62 = scmp.eq.s32.totalorder %s23, 0
      %p63 = por %p61, %p62
      %p64 = scmp.ne.s32.totalorder %s53, %s56
      %p65 = scmp.eq.s32.totalorder %s28, 2
      %p66 = por %p64, %p65
      %p67 = scmp.ne.s32.totalorder %s56, %s57
      %p68 = scmp.eq.s32.totalorder %s28, 0
      %p69 = por %p67, %p68
      %p70 = scmp.ne.s32.totalorder %s56, %s57
      %p71 = scmp.eq.s32.totalorder %s29, 2
      %p72 = por %p70, %p71
      %p74 = scmp.ne.s32.totalorder %s57, %s73
      %p75 = scmp.eq.s32.totalorder %s29, 0
      %p76 = por %p74, %p75
      %s77 = smul.u32 %s30, 3
      %s78 = sadd.s32 %s77, %s31
      %p79 = scmp.lt.s32.totalorder %s78, 0
      %s80 = scalar_select %p79, %s78, 0
      %s81 = smul.u32 %s42, 3
      %s82 = sadd.s32 %s81, %s38
      %p83 = scmp.lt.s32.totalorder %s82, 0
      %s84 = scalar_select %p83, %s82, 0
      %s85 = ssub.s32 %s80, %s84
      %p86 = scmp.eq.s32.totalorder %s85, 0
      %s88 = sadd.s32 %s87, 1
      %s89 = scalar_select %p86, %s87, %s88
      %p92 = pneg %p86
      %p93 = scmp.eq.s32.totalorder %s23, 2
      %p94 = por %p92, %p93
      %p95 = scmp.ne.s32.totalorder %s87, %s90
      %p96 = scmp.eq.s32.totalorder %s23, 0
      %p97 = por %p95, %p96
      %p98 = scmp.ne.s32.totalorder %s87, %s90
      %p99 = scmp.eq.s32.totalorder %s28, 2
      %p100 = por %p98, %p99
      %p101 = scmp.ne.s32.totalorder %s90, %s91
      %p102 = scmp.eq.s32.totalorder %s28, 0
      %p103 = por %p101, %p102
      %p104 = scmp.ne.s32.totalorder %s90, %s91
      %p105 = scmp.eq.s32.totalorder %s29, 2
      %p106 = por %p104, %p105
      %p108 = scmp.ne.s32.totalorder %s91, %s107
      %p109 = scmp.eq.s32.totalorder %s29, 0
      %p110 = por %p108, %p109
      %s111 = smul.u32 %s30, 3
      %s112 = sadd.s32 %s111, %s31
      %s113 = ssub.s32 %s112, 1
      %p114 = scmp.gt.s32.totalorder %s113, 0
      %s115 = scalar_select %p114, %s113, 0
      %p116 = scmp.lt.s32.totalorder %s115, 0
      %s117 = scalar_select %p116, %s115, 0
      %s118 = smul.u32 %s42, 3
      %s119 = sadd.s32 %s118, %s38
      %s120 = ssub.s32 %s119, 1
      %p121 = scmp.gt.s32.totalorder %s120, 0
      %s122 = scalar_select %p121, %s120, 0
      %p123 = scmp.lt.s32.totalorder %s122, 0
      %s124 = scalar_select %p123, %s122, 0
      %s125 = ssub.s32 %s117, %s124
      %p126 = scmp.eq.s32.totalorder %s125, 0
      %s128 = sadd.s32 %s127, 1
      %s129 = scalar_select %p126, %s127, %s128
      %p132 = pneg %p126
      %p133 = scmp.eq.s32.totalorder %s23, 2
      %p134 = por %p132, %p133
      %p135 = scmp.ne.s32.totalorder %s127, %s130
      %p136 = scmp.eq.s32.totalorder %s23, 0
      %p137 = por %p135, %p136
      %p138 = scmp.ne.s32.totalorder %s127, %s130
      %p139 = scmp.eq.s32.totalorder %s28, 2
      %p140 = por %p138, %p139
      %p141 = scmp.ne.s32.totalorder %s130, %s131
      %p142 = scmp.eq.s32.totalorder %s28, 0
      %p143 = por %p141, %p142
      %p144 = scmp.ne.s32.totalorder %s130, %s131
      %p145 = scmp.eq.s32.totalorder %s29, 2
      %p146 = por %p144, %p145
      %p148 = scmp.ne.s32.totalorder %s131, %s147
      %p149 = scmp.eq.s32.totalorder %s29, 0
      %p150 = por %p148, %p149
      %s151 = smul.u32 %s30, 3
      %s152 = sadd.s32 %s151, %s31
      %s153 = ssub.s32 %s152, 2
      %p154 = scmp.gt.s32.totalorder %s153, 0
      %s155 = scalar_select %p154, %s153, 0
      %p156 = scmp.lt.s32.totalorder %s155, 0
      %s157 = scalar_select %p156, %s155, 0
      %s158 = smul.u32 %s42, 3
      %s159 = sadd.s32 %s158, %s38
      %s160 = ssub.s32 %s159, 2
      %p161 = scmp.gt.s32.totalorder %s160, 0
      %s162 = scalar_select %p161, %s160, 0
      %p163 = scmp.lt.s32.totalorder %s162, 0
      %s164 = scalar_select %p163, %s162, 0
      %s165 = ssub.s32 %s157, %s164
      %p166 = scmp.eq.s32.totalorder %s165, 0
      %s168 = sadd.s32 %s167, 1
      %s169 = scalar_select %p166, %s167, %s168
      %p172 = pneg %p166
      %p173 = scmp.eq.s32.totalorder %s23, 2
      %p174 = por %p172, %p173
      %p175 = scmp.ne.s32.totalorder %s167, %s170
      %p176 = scmp.eq.s32.totalorder %s23, 0
      %p177 = por %p175, %p176
      %p178 = scmp.ne.s32.totalorder %s167, %s170
      %p179 = scmp.eq.s32.totalorder %s28, 2
      %p180 = por %p178, %p179
      %p181 = scmp.ne.s32.totalorder %s170, %s171
      %p182 = scmp.eq.s32.totalorder %s28, 0
      %p183 = por %p181, %p182
      %p184 = scmp.ne.s32.totalorder %s170, %s171
      %p185 = scmp.eq.s32.totalorder %s29, 2
      %p186 = por %p184, %p185
      %p188 = scmp.ne.s32.totalorder %s171, %s187
      %p189 = scmp.eq.s32.totalorder %s29, 0
      %p190 = por %p188, %p189
      %s191 = ssub.s32 %s30, %s42
      %p192 = scmp.eq.s32.totalorder %s191, 0
      %s194 = sadd.s32 %s193, 1
      %s195 = scalar_select %p192, %s193, %s194
      %p198 = pneg %p192
      %p199 = scmp.eq.s32.totalorder %s23, 2
      %p200 = por %p198, %p199
      %p201 = scmp.ne.s32.totalorder %s193, %s196
      %p202 = scmp.eq.s32.totalorder %s23, 0
      %p203 = por %p201, %p202
      %p204 = scmp.ne.s32.totalorder %s193, %s196
      %p205 = scmp.eq.s32.totalorder %s28, 2
      %p206 = por %p204, %p205
      %p207 = scmp.ne.s32.totalorder %s196, %s197
      %p208 = scmp.eq.s32.totalorder %s28, 0
      %p209 = por %p207, %p208
      %p210 = scmp.ne.s32.totalorder %s196, %s197
      %p211 = scmp.eq.s32.totalorder %s29, 2
      %p212 = por %p210, %p211
      %p214 = scmp.ne.s32.totalorder %s197, %s213
      %p215 = scmp.eq.s32.totalorder %s29, 0
      %p216 = por %p214, %p215
      %s217 = ssub.s32 %s30, %s42
      %p218 = scmp.eq.s32.totalorder %s217, 0
      %s220 = sadd.s32 %s219, 1
      %s221 = scalar_select %p218, %s219, %s220
      %p224 = pneg %p218
      %p225 = scmp.eq.s32.totalorder %s23, 2
      %p226 = por %p224, %p225
      %p227 = scmp.ne.s32.totalorder %s219, %s222
      %p228 = scmp.eq.s32.totalorder %s23, 0
      %p229 = por %p227, %p228
      %p230 = scmp.ne.s32.totalorder %s219, %s222
      %p231 = scmp.eq.s32.totalorder %s28, 2
      %p232 = por %p230, %p231
      %p233 = scmp.ne.s32.totalorder %s222, %s223
      %p234 = scmp.eq.s32.totalorder %s28, 0
      %p235 = por %p233, %p234
      %p236 = scmp.ne.s32.totalorder %s222, %s223
      %p237 = scmp.eq.s32.totalorder %s29, 2
      %p238 = por %p236, %p237
      %p240 = scmp.ne.s32.totalorder %s223, %s239
      %p241 = scmp.eq.s32.totalorder %s29, 0
      %p242 = por %p240, %p241
      %p243 = scmp.le.s32.totalorder 1, %s23
      %p244 = scmp.lt.s32.totalorder %s23, 4
      %p245 = pnand %p243, %p244
      %p246 = pneg %p245
      // Predicated region
      $region9: #{tpu_custom_call.1} parent=5 // pred_check
        _
      $region10: #{tpu_custom_call.1} parent=5 // pred_check_branch
        %248 = sbr.rel (%p245) target = $region12
      $region11: #{tpu_custom_call.1} parent=5 // pred_region
        %s249 = ssub.s32 %s23, 1
      $region12: #{tpu_custom_call.1} parent=5 // pred_fallthru
        _
      %p250 = scmp.lt.s32.totalorder %s23, 3
      // Predicated region
      $region13: #{tpu_custom_call.1} parent=5 // pred_check
        %p251 = pneg %p250
      $region14: #{tpu_custom_call.1} parent=5 // pred_check_branch
        %253 = sbr.rel (%p251) target = $region16
      $region15: #{tpu_custom_call.1} parent=5 // pred_region
        // Predicated region
        $region17: #{tpu_custom_call.1} parent=15 // pred_check
          %p254 = pneg %p63
        $region18: #{tpu_custom_call.1} parent=15 // pred_check_branch
          %256 = sbr.rel (%p254) target = $region20
        $region19: #{tpu_custom_call.1} parent=15 // pred_region
          %s257 = sand.u32 %s53, 1
          %s258 = scalar_lea.sflag [#allocation3], %s257
          %s259 = sand.u32 %s53, 1
          %s260 = smul.addr %s259, 16
          %s261 = scalar_lea.vmem [#allocation2], %s260
          %s262 = smul.u32 %s30, 3
          %s263 = sadd.s32 %s262, %s31
          %p264 = scmp.lt.s32.totalorder %s263, 0
          %s265 = scalar_select %p264, %s263, 0
          %s266 = smul.u32 2, %s265
          %268 = vsyncadd %s258, 0
          %s269 = smul.addr %s266, 8
          %s270 = scalar_lea.hbm %s0, %s269
          %s271 = sshll.u32 %s270, 4
          %s272 = int_to_ptr.hbm [resolvable:$true] %s271
          %s273 = sshll.u32 %s261, 4
          %s274 = int_to_ptr.vmem [resolvable:$true] %s273
          %279 = dma.hbm_to_vmem [thread:$0]  %s272, 256, %s274, %s258, 128, 128, 8
        $region20: #{tpu_custom_call.1} parent=15 // pred_fallthru
          _
        // Predicated region
        $region21: #{tpu_custom_call.1} parent=15 // pred_check
          %p280 = pneg %p97
        $region22: #{tpu_custom_call.1} parent=15 // pred_check_branch
          %282 = sbr.rel (%p280) target = $region24
        $region23: #{tpu_custom_call.1} parent=15 // pred_region
          %s283 = sand.u32 %s23, 1
          %s284 = scalar_lea.sflag [#allocation6], %s283
          %s285 = sand.u32 %s87, 1
          %s286 = smul.addr %s285, 16
          %s287 = scalar_lea.vmem [#allocation5], %s286
          %s288 = smul.u32 %s30, 3
          %s289 = sadd.s32 %s288, %s31
          %p290 = scmp.lt.s32.totalorder %s289, 0
          %s291 = scalar_select %p290, %s289, 0
          %s292 = smul.u32 2, %s291
          %294 = vsyncadd %s284, 0
          %s295 = smul.addr %s292, 8
          %s296 = scalar_lea.hbm %s1, %s295
          %s297 = sshll.u32 %s296, 4
          %s298 = int_to_ptr.hbm [resolvable:$true] %s297
          %s299 = sshll.u32 %s287, 4
          %s300 = int_to_ptr.vmem [resolvable:$true] %s299
          %305 = dma.hbm_to_vmem [thread:$0]  %s298, 256, %s300, %s284, 128, 128, 8
        $region24: #{tpu_custom_call.1} parent=15 // pred_fallthru
          _
        // Predicated region
        $region25: #{tpu_custom_call.1} parent=15 // pred_check
          %p306 = pneg %p137
        $region26: #{tpu_custom_call.1} parent=15 // pred_check_branch
          %308 = sbr.rel (%p306) target = $region28
        $region27: #{tpu_custom_call.1} parent=15 // pred_region
          %s309 = sand.u32 %s23, 1
          %s310 = scalar_lea.sflag [#allocation6], %s309
          %s311 = sand.u32 %s127, 1
          %s312 = smul.addr %s311, 8
          %s313 = scalar_lea.vmem [#allocation7], %s312
          %s314 = smul.u32 %s30, 3
          %s315 = sadd.s32 %s314, %s31
          %s316 = ssub.s32 %s315, 1
          %p317 = scmp.gt.s32.totalorder %s316, 0
          %s318 = scalar_select %p317, %s316, 0
          %p319 = scmp.lt.s32.totalorder %s318, 0
          %s320 = scalar_select %p319, %s318, 0
          %322 = vsyncadd %s310, 0
          %s323 = smul.addr %s320, 8
          %s324 = scalar_lea.hbm %s2, %s323
          %s326 = sshll.u32 %s324, 4
          %s327 = int_to_ptr.hbm [resolvable:$true] %s326
          %s328 = sshll.u32 %s313, 4
          %s329 = int_to_ptr.vmem [resolvable:$true] %s328
          %331 = dma.hbm_to_vmem [thread:$0]  %s327, 128, %s329, %s310
        $region28: #{tpu_custom_call.1} parent=15 // pred_fallthru
          _
        // Predicated region
        $region29: #{tpu_custom_call.1} parent=15 // pred_check
          %p332 = pneg %p177
        $region30: #{tpu_custom_call.1} parent=15 // pred_check_branch
          %334 = sbr.rel (%p332) target = $region32
        $region31: #{tpu_custom_call.1} parent=15 // pred_region
          %s335 = sand.u32 %s167, 1
          %s336 = scalar_lea.sflag [#allocation9], %s335
          %s337 = sand.u32 %s167, 1
          %s338 = smul.addr %s337, 8
          %s339 = scalar_lea.vmem [#allocation8], %s338
          %s340 = smul.u32 %s30, 3
          %s341 = sadd.s32 %s340, %s31
          %s342 = ssub.s32 %s341, 2
          %p343 = scmp.gt.s32.totalorder %s342, 0
          %s344 = scalar_select %p343, %s342, 0
          %p345 = scmp.lt.s32.totalorder %s344, 0
          %s346 = scalar_select %p345, %s344, 0
          %348 = vsyncadd %s336, 0
          %s349 = smul.addr %s346, 8
          %s350 = scalar_lea.hbm %s3, %s349
          %s352 = sshll.u32 %s350, 4
          %s353 = int_to_ptr.hbm [resolvable:$true] %s352
          %s354 = sshll.u32 %s339, 4
          %s355 = int_to_ptr.vmem [resolvable:$true] %s354
          %357 = dma.hbm_to_vmem [thread:$0]  %s353, 128, %s355, %s336
        $region32: #{tpu_custom_call.1} parent=15 // pred_fallthru
          _
      $region16: #{tpu_custom_call.1} parent=5 // pred_fallthru
        _
      %p358 = scmp.le.s32.totalorder 1, %s23
      %p359 = scmp.lt.s32.totalorder %s23, 4
      %p360 = pnand %p358, %p359
      %p361 = pneg %p360
      // Predicated region
      $region33: #{tpu_custom_call.1} parent=5 // pred_check
        _
      $region34: #{tpu_custom_call.1} parent=5 // pred_check_branch
        %363 = sbr.rel (%p360) target = $region36
      $region35: #{tpu_custom_call.1} parent=5 // pred_region
        %s364 = ssub.s32 %s23, 1
        %s365 = sand.u32 %s56, 1
        %s366 = scalar_lea.sflag [#allocation3], %s365
        %s367 = sand.u32 %s56, 1
        %s368 = smul.addr %s367, 16
        %s369 = scalar_lea.vmem [#allocation2], %s368
        // Predicated region
        $region37: #{tpu_custom_call.1} parent=35 // pred_check
          %p370 = pneg %p69
        $region38: #{tpu_custom_call.1} parent=35 // pred_check_branch
          %372 = sbr.rel (%p370) target = $region40
        $region39: #{tpu_custom_call.1} parent=35 // pred_region
          %374 = dma.done %s366, 256
        $region40: #{tpu_custom_call.1} parent=35 // pred_fallthru
          _
        %s375 = sand.u32 %s28, 1
        %s376 = scalar_lea.sflag [#allocation6], %s375
        %s377 = sand.u32 %s90, 1
        %s378 = smul.addr %s377, 16
        %s379 = scalar_lea.vmem [#allocation5], %s378
        // Predicated region
        $region41: #{tpu_custom_call.1} parent=35 // pred_check
          %p380 = pneg %p103
        $region42: #{tpu_custom_call.1} parent=35 // pred_check_branch
          %382 = sbr.rel (%p380) target = $region44
        $region43: #{tpu_custom_call.1} parent=35 // pred_region
          %384 = dma.done %s376, 256
        $region44: #{tpu_custom_call.1} parent=35 // pred_fallthru
          _
        %s385 = sand.u32 %s28, 1
        %s386 = scalar_lea.sflag [#allocation6], %s385
        %s387 = sand.u32 %s130, 1
        %s388 = smul.addr %s387, 8
        %s389 = scalar_lea.vmem [#allocation7], %s388
        // Predicated region
        $region45: #{tpu_custom_call.1} parent=35 // pred_check
          %p390 = pneg %p143
        $region46: #{tpu_custom_call.1} parent=35 // pred_check_branch
          %392 = sbr.rel (%p390) target = $region48
        $region47: #{tpu_custom_call.1} parent=35 // pred_region
          %394 = dma.done %s386, 128
        $region48: #{tpu_custom_call.1} parent=35 // pred_fallthru
          _
        %s395 = sand.u32 %s170, 1
        %s396 = scalar_lea.sflag [#allocation9], %s395
        %s397 = sand.u32 %s170, 1
        %s398 = smul.addr %s397, 8
        %s399 = scalar_lea.vmem [#allocation8], %s398
        // Predicated region
        $region49: #{tpu_custom_call.1} parent=35 // pred_check
          %p400 = pneg %p183
        $region50: #{tpu_custom_call.1} parent=35 // pred_check_branch
          %402 = sbr.rel (%p400) target = $region52
        $region51: #{tpu_custom_call.1} parent=35 // pred_region
          %404 = dma.done %s396, 128
        $region52: #{tpu_custom_call.1} parent=35 // pred_fallthru
          _
        %s405 = sand.u32 %s56, 1
        %s406 = scalar_lea.sflag [#allocation3], %s405
        %s407 = sand.u32 %s56, 1
        %s408 = smul.addr %s407, 16
        %s409 = scalar_lea.vmem [#allocation2], %s408
        %p410 = pneg %p69
        %p411 = pneg %p66
        %s412 = sand.u32 %s28, 1
        %s413 = scalar_lea.sflag [#allocation6], %s412
        %s414 = sand.u32 %s90, 1
        %s415 = smul.addr %s414, 16
        %s416 = scalar_lea.vmem [#allocation5], %s415
        %p417 = pneg %p103
        %p418 = pneg %p100
        %s419 = sand.u32 %s28, 1
        %s420 = scalar_lea.sflag [#allocation6], %s419
        %s421 = sand.u32 %s130, 1
        %s422 = smul.addr %s421, 8
        %s423 = scalar_lea.vmem [#allocation7], %s422
        %p424 = pneg %p143
        %p425 = pneg %p140
        %s426 = sand.u32 %s170, 1
        %s427 = scalar_lea.sflag [#allocation9], %s426
        %s428 = sand.u32 %s170, 1
        %s429 = smul.addr %s428, 8
        %s430 = scalar_lea.vmem [#allocation8], %s429
        %p431 = pneg %p183
        %p432 = pneg %p180
        %p433 = pneg %p209
        %p434 = pneg %p206
        %p435 = pneg %p235
        %p436 = pneg %p232
        %s437 = smul.u32 %s32, 3
        %s438 = sadd.s32 %s437, %s33
        %p439 = scmp.lt.s32.totalorder %s438, 0
        %s440 = scalar_select %p439, %s438, 0
        %s441 = smul.u32 2, %s440
        %s442 = smul.u32 %s32, 3
        %s443 = sadd.s32 %s442, %s33
        %p444 = scmp.lt.s32.totalorder %s443, 0
        %s445 = scalar_select %p444, %s443, 0
        %s446 = smul.u32 2, %s445
        %s447 = smul.u32 %s32, 3
        %s448 = sadd.s32 %s447, %s33
        %s449 = ssub.s32 %s448, 1
        %p450 = scmp.gt.s32.totalorder %s449, 0
        %s451 = scalar_select %p450, %s449, 0
        %p452 = scmp.lt.s32.totalorder %s451, 0
        %s453 = scalar_select %p452, %s451, 0
        %s454 = smul.u32 %s32, 3
        %s455 = sadd.s32 %s454, %s33
        %s456 = ssub.s32 %s455, 2
        %p457 = scmp.gt.s32.totalorder %s456, 0
        %s458 = scalar_select %p457, %s456, 0
        %p459 = scmp.lt.s32.totalorder %s458, 0
        %s460 = scalar_select %p459, %s458, 0
        %s461 = smul.u32 %s32, 3
        %s462 = sadd.s32 %s461, %s33
        %p463 = scmp.eq.s32.totalorder %s33, 0
        // Predicated region
        $region53: #{tpu_custom_call.1} parent=35 // pred_check
          %p464 = pneg %p463
        $region54: #{tpu_custom_call.1} parent=35 // pred_check_branch
          %466 = sbr.rel (%p464) target = $region56
        $region55: #{tpu_custom_call.1} parent=35 // pred_region
          %467 = vst [vmem:[#allocation10] sm:$0xff] 0.0
          %468 = vst [vmem:[#allocation11] sm:$0xff] 0.0
        $region56: #{tpu_custom_call.1} parent=35 // pred_fallthru
          _
        %p469 = scmp.lt.s32.totalorder %s462, 1
        // Predicated region
        $region57: #{tpu_custom_call.1} parent=35 // pred_check
          %p470 = pneg %p469
        $region58: #{tpu_custom_call.1} parent=35 // pred_check_branch
          %472 = sbr.rel (%p470) target = $region60
        $region59: #{tpu_custom_call.1} parent=35 // pred_region
          %v473 = vld [vmem:[%s369] sm:$0xff]
          %v474 = vld [vmem:[%s369 + $0x8] sm:$0xff]
          %v475 = vld [vmem:[%s379] sm:$0xff]
          %v476 = vld [vmem:[%s379 + $0x8] sm:$0xff]
          %v477 = vsub.f32 %v473, %v475
          %v478 = vsub.f32 %v474, %v476
          %v479 = vld [vmem:[#allocation10] sm:$0xff]
          %v480 = vmul.f32 %v477, %v477
          %v481 = vmul.f32 %v478, %v478
          %v482 = vadd.f32 %v480, %v481
          %v483 = vadd.f32 %v479, %v482
          %484 = vst [vmem:[#allocation10] sm:$0xff] %v483
        $region60: #{tpu_custom_call.1} parent=35 // pred_fallthru
          _
        %p485 = scmp.ge.s32.totalorder %s462, 1
        %p486 = scmp.lt.s32.totalorder %s462, 2
        %p487 = pnand %p485, %p486
        %p488 = pneg %p487
        // Predicated region
        $region61: #{tpu_custom_call.1} parent=35 // pred_check
          _
        $region62: #{tpu_custom_call.1} parent=35 // pred_check_branch
          %490 = sbr.rel (%p487) target = $region64
        $region63: #{tpu_custom_call.1} parent=35 // pred_region
          %v491 = vld [vmem:[%s389] sm:$0xff]
          %v492 = vld [vmem:[#allocation11] sm:$0xff]
          %v493 = vlog2.pop %v491
          %v494 = vmul.f32 %v493, 0.6931472
          %v495 = vadd.f32 %v494, 0.0
          %v496 = vadd.f32 %v492, %v495
          %497 = vst [vmem:[#allocation11] sm:$0xff] %v496
        $region64: #{tpu_custom_call.1} parent=35 // pred_fallthru
          _
        %p498 = scmp.ge.s32.totalorder %s462, 2
        %p499 = scmp.lt.s32.totalorder %s462, 3
        %p500 = pnand %p498, %p499
        %p501 = pneg %p500
        // Predicated region
        $region65: #{tpu_custom_call.1} parent=35 // pred_check
          _
        $region66: #{tpu_custom_call.1} parent=35 // pred_check_branch
          %503 = sbr.rel (%p500) target = $region68
        $region67: #{tpu_custom_call.1} parent=35 // pred_region
          %v504 = vld [vmem:[%s399] sm:$0xff]
          %v505 = vld [vmem:[#allocation11] sm:$0xff]
          %v506 = vlog2.pop %v504
          %v507 = vmul.f32 %v506, 0.6931472
          %v508 = vadd.f32 %v507, 0.0
          %v509 = vadd.f32 %v505, %v508
          %510 = vst [vmem:[#allocation11] sm:$0xff] %v509
        $region68: #{tpu_custom_call.1} parent=35 // pred_fallthru
          _
        // Predicated region
        $region69: #{tpu_custom_call.1} parent=35 // pred_check
          %p511 = pneg %p206
        $region70: #{tpu_custom_call.1} parent=35 // pred_check_branch
          %513 = sbr.rel (%p511) target = $region72
        $region71: #{tpu_custom_call.1} parent=35 // pred_region
          %515 = vsyncadd [#allocation4], 0
          %s516 = smul.addr %s32, 8
          %s517 = scalar_lea.hbm %s4, %s516
          %s519 = sshll.u32 [#allocation10], 4
          %s520 = int_to_ptr.vmem [resolvable:$true] %s519
          %s521 = sshll.u32 %s517, 4
          %s522 = int_to_ptr.hbm [resolvable:$true] %s521
          %524 = dma.vmem_to_hbm [thread:$0]  %s520, 128, %s522, [#allocation4]
        $region72: #{tpu_custom_call.1} parent=35 // pred_fallthru
          _
        // Predicated region
        $region73: #{tpu_custom_call.1} parent=35 // pred_check
          %p525 = pneg %p232
        $region74: #{tpu_custom_call.1} parent=35 // pred_check_branch
          %527 = sbr.rel (%p525) target = $region76
        $region75: #{tpu_custom_call.1} parent=35 // pred_region
          %529 = vsyncadd [#allocation12], 0
          %s530 = smul.addr %s32, 8
          %s531 = scalar_lea.hbm %s5, %s530
          %s533 = sshll.u32 [#allocation11], 4
          %s534 = int_to_ptr.vmem [resolvable:$true] %s533
          %s535 = sshll.u32 %s531, 4
          %s536 = int_to_ptr.hbm [resolvable:$true] %s535
          %538 = dma.vmem_to_hbm [thread:$0]  %s534, 128, %s536, [#allocation12]
        $region76: #{tpu_custom_call.1} parent=35 // pred_fallthru
          _
        // Predicated region
        $region77: #{tpu_custom_call.1} parent=35 // pred_check
          %p539 = pneg %p206
        $region78: #{tpu_custom_call.1} parent=35 // pred_check_branch
          %541 = sbr.rel (%p539) target = $region80
        $region79: #{tpu_custom_call.1} parent=35 // pred_region
          %543 = dma.done [#allocation4], 128
        $region80: #{tpu_custom_call.1} parent=35 // pred_fallthru
          _
        // Predicated region
        $region81: #{tpu_custom_call.1} parent=35 // pred_check
          %p544 = pneg %p232
        $region82: #{tpu_custom_call.1} parent=35 // pred_check_branch
          %546 = sbr.rel (%p544) target = $region84
        $region83: #{tpu_custom_call.1} parent=35 // pred_region
          %548 = dma.done [#allocation12], 128
        $region84: #{tpu_custom_call.1} parent=35 // pred_fallthru
          _
      $region36: #{tpu_custom_call.1} parent=5 // pred_fallthru
        _
      %p549 = scmp.le.s32.totalorder 2, %s23
      // Predicated region
      $region85: #{tpu_custom_call.1} parent=5 // pred_check
        %p550 = pneg %p549
      $region86: #{tpu_custom_call.1} parent=5 // pred_check_branch
        %552 = sbr.rel (%p550) target = $region88
      $region87: #{tpu_custom_call.1} parent=5 // pred_region
        %s553 = ssub.s32 %s23, 2
      $region88: #{tpu_custom_call.1} parent=5 // pred_fallthru
        _
    $region6: #{tpu_custom_call.1} parent=1 // loop_footer
      %s27 = sadd.s32 1, %s23
    $region7: #{tpu_custom_call.1} parent=1 // loop_footer_branch
      %22 = sbr.rel target = $region3
    $region8: #{tpu_custom_call.1} parent=1 // loop_exit
      _
    %554 = vsyncpa [#allocation3], 1
    %s555 = scalar_lea.sflag [#allocation3], 1
    %556 = vsyncpa %s555, 1
    %557 = vsyncpa [#allocation6], 1
    %s558 = scalar_lea.sflag [#allocation6], 1
    %559 = vsyncpa %s558, 1
    %560 = vsyncpa [#allocation9], 1
    %s561 = scalar_lea.sflag [#allocation9], 1
    %562 = vsyncpa %s561, 1
    %563 = vsyncpa [#allocation4], 1
    %s564 = scalar_lea.sflag [#allocation4], 1
    %565 = vsyncpa %s564, 1
    %566 = vsyncpa [#allocation12], 1

</llo_original>
